<compile_context>
chip_gen: v7x
topology: tpu7x:2x2x1
jax: 0.10.0
libtpu: 0.0.40
codegen_flags: <defaults>
</compile_context>

<pallas_src>
import math
from typing import NamedTuple, Tuple

import jax
import jax.numpy as jnp
import numpy as np
from jax import lax
from jax.experimental import pallas as pl
from jax.experimental.pallas import tpu as pltpu


# ----------------------------------------------------------------------------
# Activation (shared by the Pallas kernel and the pure-JAX reference)
# ----------------------------------------------------------------------------
def _apply_act(y, act):
    if act == "leakyrelu":
        return jnp.where(y >= 0.0, y, 0.01 * y)
    if act == "tanh":
        return jnp.tanh(y)
    if act == "sigmoid":
        return 1.0 / (1.0 + jnp.exp(-y))
    if act == "softmax":
        e = jnp.exp(y - jnp.max(y, axis=1, keepdims=True))
        return e / jnp.sum(e, axis=1, keepdims=True)
    return jnp.maximum(y, 0.0)  # 'relu' and default


# ----------------------------------------------------------------------------
# Parameter construction (deterministic, PyTorch-Linear-style uniform init)
# Weights stored pre-transposed as [in_features, out_features]; bias as [1, N].
# ----------------------------------------------------------------------------
def _init_linear(key, in_f, out_f):
    kw, kb = jax.random.split(key)
    bound = 1.0 / math.sqrt(in_f)
    w = jax.random.uniform(kw, (in_f, out_f), jnp.float32, -bound, bound)
    b = jax.random.uniform(kb, (1, out_f), jnp.float32, -bound, bound)
    return (w, b)


def _init_mlp(key, in_f, sequence_arr):
    params = []
    prev = in_f
    for n in sequence_arr:
        key, sub = jax.random.split(key)
        params.append(_init_linear(sub, prev, n))
        prev = n
    return params


def _round_up(x, m):
    return (x + m - 1) // m * m


def _zeros_index_map(ndim):
    if ndim == 1:
        return lambda: (0,)
    if ndim == 2:
        return lambda: (0, 0)
    return lambda: (0, 0, 0)


def _vmem_limit_bytes(footprint_bytes):
    """Footprint-derived scoped-VMEM limit with per-generation headroom."""
    phys = None
    try:
        info = pltpu.get_tpu_info()
        phys = int(getattr(info, "vmem_capacity_bytes", 0)) or None
    except Exception:
        phys = None
    cap = int(phys * 0.9) if phys else 64 * 1024 * 1024
    want = 2 * int(footprint_bytes) + (16 << 20)
    return int(max(32 << 20, min(want, cap)))


# ----------------------------------------------------------------------------
# Parameter packing: one weight slab + one bias slab -> two DMAs total.
# ----------------------------------------------------------------------------
class _ParamPacker:
    def __init__(self, w_dtype):
        self.w_dtype = jnp.dtype(w_dtype)
        # sublane alignment: 8 rows for 4-byte dtypes, 16 rows for 2-byte
        self.row_align = 8 * max(1, 4 // self.w_dtype.itemsize)
        self._weights = []   # (row_off, np.ndarray[rows, cols])
        self._row = 0
        self._biases = []    # flat np arrays, one slab row each
        self._w_cols = 0
        self._b_cols = 0

    def add_weight(self, w):                 # w: [rows, cols]
        w = np.asarray(w, dtype=np.float32)
        off = self._row
        self._weights.append((off, w))
        self._row += _round_up(w.shape[0], self.row_align)
        self._w_cols = max(self._w_cols, w.shape[1])
        return off

    def add_bias(self, b):                   # b: [1, out_f] or [out_f]
        b = np.asarray(b, dtype=np.float32).reshape(-1)
        self._biases.append(b)
        self._b_cols = max(self._b_cols, b.shape[0])
        return len(self._biases) - 1

    def finalize(self):
        w_rows = _round_up(max(self._row, self.row_align), self.row_align)
        w_cols = _round_up(max(self._w_cols, 1), 128)
        w_slab = np.zeros((w_rows, w_cols), np.float32)
        for off, w in self._weights:
            w_slab[off:off + w.shape[0], :w.shape[1]] = w
        b_rows = _round_up(max(len(self._biases), 1), 8)
        b_cols = _round_up(max(self._b_cols, 1), 128)
        b_slab = np.zeros((b_rows, b_cols), np.float32)
        for i, b in enumerate(self._biases):
            b_slab[i, :b.shape[0]] = b
        return (jnp.asarray(w_slab, dtype=self.w_dtype),
                jnp.asarray(b_slab, dtype=jnp.float32))


class _LayerPlan(NamedTuple):
    w_off: int                  # row offset into the packed weight slab
    out_f: int
    b_row: int                  # row index into the packed bias slab
    splits: Tuple[int, ...]     # K-split sizes (sum == in_features)


class _FcPlan(NamedTuple):
    w_off: int                  # row offset of the row-packed fc weight pieces
    b_row: int
    splits: Tuple[int, ...]


# ----------------------------------------------------------------------------
# OldAnalogyModel equivalent — single fused Pallas kernel forward
# ----------------------------------------------------------------------------
class OldAnalogyModelPallas:
    def __init__(self, size=784, input_layers=(), first_layers=(),
                 second_layers=(), using_shared_weight=False, act="relu",
                 param_dtype=jnp.float32, key=jax.random.PRNGKey(0)):
        self.size = size
        self.input_layers = list(input_layers)
        self.first_layers = list(first_layers)
        self.second_layers = list(second_layers)
        self.using_shared_weight = using_shared_weight
        self.act = act
        self.param_dtype = jnp.dtype(param_dtype)

        keys = jax.random.split(key, 8)
        temp_in = size
        if self.using_shared_weight:
            if self.input_layers:
                self.il1 = _init_mlp(keys[0], size, self.input_layers)
                self.il2 = _init_mlp(keys[1], size, self.input_layers)
                temp_in = self.input_layers[-1]
        elif self.input_layers:
            self.il1 = _init_mlp(keys[0], size, self.input_layers)
            self.il2 = _init_mlp(keys[1], size, self.input_layers)
            self.il3 = _init_mlp(keys[2], size, self.input_layers)
            self.il4 = _init_mlp(keys[3], size, self.input_layers)
            temp_in = self.input_layers[-1]

        temp_in = temp_in * 2
        if self.using_shared_weight:
            if self.first_layers:
                self.fl = _init_mlp(keys[4], temp_in, self.first_layers)
                temp_in = self.first_layers[-1]
        elif self.first_layers:
            self.fl1 = _init_mlp(keys[4], temp_in, self.first_layers)
            self.fl2 = _init_mlp(keys[5], temp_in, self.first_layers)
            temp_in = self.first_layers[-1]

        temp_in = temp_in * 2
        if self.second_layers:
            self.sl = _init_mlp(keys[6], temp_in, self.second_layers)
            temp_in = self.second_layers[-1]

        self.fc_out = _init_linear(keys[7], temp_in, 1)  # Linear(temp_in,1)+Sigmoid

        self._build_fused_plan()

    # ------------------------------------------------------------------
    # Build packed parameter slabs + static layer plans (offsets/splits).
    # ------------------------------------------------------------------
    def _build_fused_plan(self):
        pk = _ParamPacker(self.param_dtype)

        def pack_mlp(mlp, first_splits):
            plan = []
            for j, (w, b) in enumerate(mlp):
                splits = tuple(first_splits) if j == 0 else (int(w.shape[0]),)
                plan.append(_LayerPlan(pk.add_weight(w), int(w.shape[1]),
                                       pk.add_bias(b), splits))
            return plan

        # ---- stage A: input MLPs ----------------------------------------
        if self.input_layers:
            if self.using_shared_weight:
                il_plans = [pack_mlp(self.il1, (self.size,)),
                            pack_mlp(self.il2, (self.size,))]   # packed once
            else:
                il_plans = [pack_mlp(m, (self.size,))
                            for m in (self.il1, self.il2, self.il3, self.il4)]
            n_hidden = self.input_layers[-1]
        else:
            il_plans = []
            n_hidden = self.size

        # ---- stage B: first MLPs (consume concat of 2 branch outputs) ----
        if self.first_layers:
            split_k = (n_hidden, n_hidden)
            if self.using_shared_weight:
                fl_plans = [pack_mlp(self.fl, split_k)]
            else:
                fl_plans = [pack_mlp(self.fl1, split_k),
                            pack_mlp(self.fl2, split_k)]
            pair_pieces, pair_width = 1, self.first_layers[-1]
        else:
            fl_plans = []
            pair_pieces, pair_width = 2, n_hidden

        # ---- stage C: second MLP (consumes concat of both pairs) ---------
        layer3_split = tuple([pair_width] * (2 * pair_pieces))
        if self.second_layers:
            sl_plan = pack_mlp(self.sl, layer3_split)
            final_split = (self.second_layers[-1],)
        else:
            sl_plan = []
            final_split = layer3_split

        # ---- stage D: fc_out weight row-packed (one lane-0 row per piece) -
        w_fc, b_fc = self.fc_out
        wf = np.asarray(w_fc, np.float32)[:, 0]
        fc_rows = np.zeros((len(final_split), max(final_split)), np.float32)
        off = 0
        for j, k in enumerate(final_split):
            fc_rows[j, :k] = wf[off:off + k]
            off += k
        fc_plan = _FcPlan(pk.add_weight(fc_rows), pk.add_bias(b_fc),
                          tuple(final_split))

        self._w_slab, self._b_slab = pk.finalize()
        self._il_plans = il_plans
        self._fl_plans = fl_plans
        self._sl_plan = sl_plan
        self._fc_plan = fc_plan
        self._n_hidden = n_hidden

    # ------------------------------------------------------------------
    # The single fused kernel: every matmul + bias + activation in VMEM.
    # ------------------------------------------------------------------
    def _make_kernel(self, batch):
        il_plans, fl_plans = self._il_plans, self._fl_plans
        sl_plan, fc_plan = self._sl_plan, self._fc_plan
        act = self.act
        shared = self.using_shared_weight
        has_il = bool(self.input_layers)
        has_fl = bool(self.first_layers)
        has_sl = bool(self.second_layers)
        B = batch
        # Merge shared-weight branches into one [2B,...] MXU operand only when
        # the batch concat is sublane-tile aligned (B % 8 == 0).
        merge = shared and (B % 8 == 0)

        def kernel(*refs):
            x_refs = refs[0:4]
            w_ref, b_ref = refs[4], refs[5]
            out_ref = refs[6]
            h_refs = refs[7:11] if has_il else ()

            def linear(pieces, lp, act_name):
                # y = act( sum_i piece_i @ W[rows_i] + b ): torch.cat folded
                # into a K-split accumulation over static slab sub-views.
                acc = None
                koff = 0
                for piece, k in zip(pieces, lp.splits):
                    w = w_ref[lp.w_off + koff: lp.w_off + koff + k, 0:lp.out_f]
                    lhs = piece if piece.dtype == w.dtype else piece.astype(w.dtype)
                    d = jnp.dot(lhs, w, preferred_element_type=jnp.float32)
                    acc = d if acc is None else acc + d
                    koff += k
                bias = b_ref[lp.b_row:lp.b_row + 1, 0:lp.out_f]
                return _apply_act(acc + bias, act_name)

            def run_plan(pieces, plan, act_name):
                for lp in plan:
                    pieces = [linear(pieces, lp, act_name)]
                return pieces

            xs = [x_refs[i][...] for i in range(4)]

            # ---- stage A: 4 input branches --------------------------------
            if has_il:
                if merge:
                    a01 = run_plan([jnp.concatenate([xs[0], xs[1]], axis=0)],
                                   il_plans[0], act)[0]
                    a23 = run_plan([jnp.concatenate([xs[2], xs[3]], axis=0)],
                                   il_plans[1], act)[0]
                    h = [a01[:B], a01[B:], a23[:B], a23[B:]]
                elif shared:
                    h = [run_plan([xs[0]], il_plans[0], act)[0],
                         run_plan([xs[1]], il_plans[0], act)[0],
                         run_plan([xs[2]], il_plans[1], act)[0],
                         run_plan([xs[3]], il_plans[1], act)[0]]
                else:
                    h = [run_plan([xs[i]], il_plans[i], act)[0] for i in range(4)]
                for i in range(4):
                    h_refs[i][...] = h[i].astype(h_refs[i].dtype)
            else:
                h = xs

            # ---- stage B: pairwise "concat" -> first MLPs -----------------
            if has_fl:
                if merge:
                    left = jnp.concatenate([h[0], h[2]], axis=0)
                    right = jnp.concatenate([h[1], h[3]], axis=0)
                    merged = run_plan([left, right], fl_plans[0], act)[0]
                    layer2 = [[merged[:B]], [merged[B:]]]
                else:
                    p0 = fl_plans[0]
                    p1 = fl_plans[0] if shared else fl_plans[1]
                    layer2 = [run_plan([h[0], h[1]], p0, act),
                              run_plan([h[2], h[3]], p1, act)]
            else:
                layer2 = [[h[0], h[1]], [h[2], h[3]]]

            # ---- stage C: "concat" of pairs -> second MLP ------------------
            pieces = layer2[0] + layer2[1]
            if has_sl:
                pieces = run_plan(pieces, sl_plan, act)

            # ---- stage D: fc_out as VPU multiply + lane reduce + sigmoid ---
            acc = None
            for j, (piece, k) in enumerate(zip(pieces, fc_plan.splits)):
                wrow = w_ref[fc_plan.w_off + j: fc_plan.w_off + j + 1,
                             0:k].astype(jnp.float32)                  # [1, k]
                s = jnp.sum(piece.astype(jnp.float32) * wrow,
                            axis=-1, keepdims=True)                    # [B, 1]
                acc = s if acc is None else acc + s
            y = _apply_act(acc + b_ref[fc_plan.b_row:fc_plan.b_row + 1, 0:1],
                           "sigmoid")
            out_ref[...] = y.astype(out_ref.dtype)

        return kernel

    def __call__(self, x1, x2, x3, x4):
        xs = [jnp.asarray(a, jnp.float32).reshape(a.shape[0], -1)
              for a in (x1, x2, x3, x4)]
        B = xs[0].shape[0]

        inputs = xs + [self._w_slab, self._b_slab]
        in_specs = [pl.BlockSpec(a.shape, _zeros_index_map(a.ndim))
                    for a in inputs]

        out_shapes = [jax.ShapeDtypeStruct((B, 1), jnp.float32)]
        if self.input_layers:
            out_shapes += [jax.ShapeDtypeStruct((B, self._n_hidden), jnp.float32)
                           for _ in range(4)]
        out_specs = tuple(pl.BlockSpec(s.shape, _zeros_index_map(len(s.shape)))
                          for s in out_shapes)

        footprint = sum(int(np.prod(a.shape)) * a.dtype.itemsize for a in inputs)
        footprint += sum(int(np.prod(s.shape)) * jnp.dtype(s.dtype).itemsize
                         for s in out_shapes)

        outs = pl.pallas_call(
            self._make_kernel(B),
            out_shape=tuple(out_shapes),
            in_specs=in_specs,
            out_specs=out_specs,
            compiler_params=pltpu.CompilerParams(
                vmem_limit_bytes=_vmem_limit_bytes(footprint)),
        )(*inputs)

        if self.input_layers:
            out, h1, h2, h3, h4 = outs
        else:
            (out,) = outs
            h1, h2, h3, h4 = xs
        return (out, h1, h2, h3, h4)


# ----------------------------------------------------------------------------
# Pure-JAX reference (mirrors the PyTorch forward, incl. shared-weight path
# and the kernel's weight dtype / cast-at-boundary behaviour).
# ----------------------------------------------------------------------------
def _ref_forward(model, x1, x2, x3, x4):
    dt = jnp.dtype(model.param_dtype)
    HIGH = lax.Precision.HIGHEST

    def q(a):  # same quantization the packed slab applies
        return jnp.asarray(a, dtype=dt).astype(jnp.float32)

    def run(mlp, x):
        for (w, b) in mlp:
            lhs = x.astype(dt).astype(jnp.float32)
            x = _apply_act(jnp.dot(lhs, q(w), precision=HIGH) + b, model.act)
        return x

    l1 = [jnp.asarray(a, jnp.float32).reshape(a.shape[0], -1)
          for a in (x1, x2, x3, x4)]
    if model.input_layers:
        mlps = ((model.il1, model.il1, model.il2, model.il2)
                if model.using_shared_weight
                else (model.il1, model.il2, model.il3, model.il4))
        l1 = [run(m, x) for m, x in zip(mlps, l1)]
    l2 = [jnp.concatenate((l1[0], l1[1]), 1), jnp.concatenate((l1[2], l1[3]), 1)]
    if model.first_layers:
        fmlps = ((model.fl, model.fl) if model.using_shared_weight
                 else (model.fl1, model.fl2))
        l2 = [run(m, x) for m, x in zip(fmlps, l2)]
    l3 = jnp.concatenate((l2[0], l2[1]), 1)
    if model.second_layers:
        l3 = run(model.sl, l3)
    w, b = model.fc_out
    y = jnp.sum(l3 * q(w)[:, 0][None, :], axis=-1, keepdims=True) + b
    return _apply_act(y, "sigmoid"), l1


if __name__ == "__main__":
    # Small, conv-style NCHW inputs: [batch, channels=1, H=4, W=8] -> 32 features.
    C, H, W = 1, 4, 8
    size = C * H * W  # 32

    key = jax.random.PRNGKey(0)
    kx, kp1, kp2, kp3 = jax.random.split(key, 4)

    def make_inputs(batch, k):
        ks = jax.random.split(k, 4)
        return [jax.random.normal(kk, (batch, C, H, W), jnp.float32) for kk in ks]

    def check(model, xs, rtol, atol):
        outs = model(*xs)
        jax.block_until_ready(outs)
        ref_out, ref_h = _ref_forward(model, *xs)
        np.testing.assert_allclose(np.asarray(outs[0]), np.asarray(ref_out),
                                   rtol=rtol, atol=atol)
        for got, want in zip(outs[1:], ref_h):
            np.testing.assert_allclose(np.asarray(got), np.asarray(want),
                                       rtol=rtol, atol=atol)
        return outs

    # 1) non-shared weights, f32 params, B=2
    xs2 = make_inputs(2, kx)
    m1 = OldAnalogyModelPallas(size=size, input_layers=[32], first_layers=[32],
                               second_layers=[32], using_shared_weight=False,
                               act="relu", key=kp1)
    o1 = check(m1, xs2, rtol=1e-4, atol=1e-5)
    assert o1[0].shape == (2, 1) and o1[1].shape == (2, 32)

    # 2) shared weights, f32, B=8 -> exercises in-kernel branch merging (B % 8 == 0)
    xs8 = make_inputs(8, kx)
    m2 = OldAnalogyModelPallas(size=size, input_layers=[32], first_layers=[32],
                               second_layers=[32], using_shared_weight=True,
                               act="relu", key=kp2)
    check(m2, xs8, rtol=1e-4, atol=1e-5)

    # 3) bf16 MXU-input weights (v6e/v7x style), f32 accumulation + activations
    m3 = OldAnalogyModelPallas(size=size, input_layers=[32], first_layers=[32],
                               second_layers=[32], using_shared_weight=False,
                               act="tanh", param_dtype=jnp.bfloat16, key=kp3)
    check(m3, xs8, rtol=1e-2, atol=1e-3)

    print("KERNEL_OK")
</pallas_src>

<mosaic_0001>
module attributes {stable_mosaic.version = 11 : i64} {
  func.func @kernel(%arg0: memref<2x32xf32, #tpu.memory_space<vmem>>, %arg1: memref<2x32xf32, #tpu.memory_space<vmem>>, %arg2: memref<2x32xf32, #tpu.memory_space<vmem>>, %arg3: memref<2x32xf32, #tpu.memory_space<vmem>>, %arg4: memref<328x128xf32, #tpu.memory_space<vmem>>, %arg5: memref<8x128xf32, #tpu.memory_space<vmem>>, %arg6: memref<2x1xf32, #tpu.memory_space<vmem>>, %arg7: memref<2x32xf32, #tpu.memory_space<vmem>>, %arg8: memref<2x32xf32, #tpu.memory_space<vmem>>, %arg9: memref<2x32xf32, #tpu.memory_space<vmem>>, %arg10: memref<2x32xf32, #tpu.memory_space<vmem>>) attributes {dimension_semantics = [], scalar_prefetch = 0 : i64, scratch_operands = 0 : i64, tpu.core_type = #tpu.core_type<tc>} {
    %c0 = arith.constant 0 : index
    %c0_0 = arith.constant 0 : index
    %0 = vector.load %arg0[%c0, %c0_0] : memref<2x32xf32, #tpu.memory_space<vmem>>, vector<2x32xf32>
    %c0_1 = arith.constant 0 : index
    %c0_2 = arith.constant 0 : index
    %1 = vector.load %arg1[%c0_1, %c0_2] : memref<2x32xf32, #tpu.memory_space<vmem>>, vector<2x32xf32>
    %c0_3 = arith.constant 0 : index
    %c0_4 = arith.constant 0 : index
    %2 = vector.load %arg2[%c0_3, %c0_4] : memref<2x32xf32, #tpu.memory_space<vmem>>, vector<2x32xf32>
    %c0_5 = arith.constant 0 : index
    %c0_6 = arith.constant 0 : index
    %3 = vector.load %arg3[%c0_5, %c0_6] : memref<2x32xf32, #tpu.memory_space<vmem>>, vector<2x32xf32>
    %c0_7 = arith.constant 0 : index
    %c0_8 = arith.constant 0 : index
    %4 = vector.load %arg4[%c0_7, %c0_8] : memref<328x128xf32, #tpu.memory_space<vmem>>, vector<32x32xf32>
    %cst = arith.constant dense<0.000000e+00> : vector<2x32xf32>
    %5 = tpu.matmul %0, %4, %cst {dimension_numbers = #tpu.dot_dimension_numbers<[1], [0], [0], [1], [0, 0, 1, 1], [], []>} : vector<2x32xf32>, vector<32x32xf32>, vector<2x32xf32> -> vector<2x32xf32>
    %c0_9 = arith.constant 0 : index
    %c0_10 = arith.constant 0 : index
    %6 = vector.load %arg5[%c0_9, %c0_10] : memref<8x128xf32, #tpu.memory_space<vmem>>, vector<1x32xf32>
    %7 = vector.broadcast %6 : vector<1x32xf32> to vector<2x32xf32>
    %8 = arith.addf %5, %7 : vector<2x32xf32>
    %cst_11 = arith.constant 0.000000e+00 : f32
    %9 = vector.broadcast %cst_11 : f32 to vector<2x32xf32>
    %10 = arith.maximumf %8, %9 : vector<2x32xf32>
    %c32 = arith.constant 32 : index
    %c0_12 = arith.constant 0 : index
    %11 = vector.load %arg4[%c32, %c0_12] : memref<328x128xf32, #tpu.memory_space<vmem>>, vector<32x32xf32>
    %cst_13 = arith.constant dense<0.000000e+00> : vector<2x32xf32>
    %12 = tpu.matmul %1, %11, %cst_13 {dimension_numbers = #tpu.dot_dimension_numbers<[1], [0], [0], [1], [0, 0, 1, 1], [], []>} : vector<2x32xf32>, vector<32x32xf32>, vector<2x32xf32> -> vector<2x32xf32>
    %c1 = arith.constant 1 : index
    %c0_14 = arith.constant 0 : index
    %13 = vector.load %arg5[%c1, %c0_14] : memref<8x128xf32, #tpu.memory_space<vmem>>, vector<1x32xf32>
    %14 = vector.broadcast %13 : vector<1x32xf32> to vector<2x32xf32>
    %15 = arith.addf %12, %14 : vector<2x32xf32>
    %cst_15 = arith.constant 0.000000e+00 : f32
    %16 = vector.broadcast %cst_15 : f32 to vector<2x32xf32>
    %17 = arith.maximumf %15, %16 : vector<2x32xf32>
    %c64 = arith.constant 64 : index
    %c0_16 = arith.constant 0 : index
    %18 = vector.load %arg4[%c64, %c0_16] : memref<328x128xf32, #tpu.memory_space<vmem>>, vector<32x32xf32>
    %cst_17 = arith.constant dense<0.000000e+00> : vector<2x32xf32>
    %19 = tpu.matmul %2, %18, %cst_17 {dimension_numbers = #tpu.dot_dimension_numbers<[1], [0], [0], [1], [0, 0, 1, 1], [], []>} : vector<2x32xf32>, vector<32x32xf32>, vector<2x32xf32> -> vector<2x32xf32>
    %c2 = arith.constant 2 : index
    %c0_18 = arith.constant 0 : index
    %20 = vector.load %arg5[%c2, %c0_18] : memref<8x128xf32, #tpu.memory_space<vmem>>, vector<1x32xf32>
    %21 = vector.broadcast %20 : vector<1x32xf32> to vector<2x32xf32>
    %22 = arith.addf %19, %21 : vector<2x32xf32>
    %cst_19 = arith.constant 0.000000e+00 : f32
    %23 = vector.broadcast %cst_19 : f32 to vector<2x32xf32>
    %24 = arith.maximumf %22, %23 : vector<2x32xf32>
    %c96 = arith.constant 96 : index
    %c0_20 = arith.constant 0 : index
    %25 = vector.load %arg4[%c96, %c0_20] : memref<328x128xf32, #tpu.memory_space<vmem>>, vector<32x32xf32>
    %cst_21 = arith.constant dense<0.000000e+00> : vector<2x32xf32>
    %26 = tpu.matmul %3, %25, %cst_21 {dimension_numbers = #tpu.dot_dimension_numbers<[1], [0], [0], [1], [0, 0, 1, 1], [], []>} : vector<2x32xf32>, vector<32x32xf32>, vector<2x32xf32> -> vector<2x32xf32>
    %c3 = arith.constant 3 : index
    %c0_22 = arith.constant 0 : index
    %27 = vector.load %arg5[%c3, %c0_22] : memref<8x128xf32, #tpu.memory_space<vmem>>, vector<1x32xf32>
    %28 = vector.broadcast %27 : vector<1x32xf32> to vector<2x32xf32>
    %29 = arith.addf %26, %28 : vector<2x32xf32>
    %cst_23 = arith.constant 0.000000e+00 : f32
    %30 = vector.broadcast %cst_23 : f32 to vector<2x32xf32>
    %31 = arith.maximumf %29, %30 : vector<2x32xf32>
    %c0_24 = arith.constant 0 : index
    %c0_25 = arith.constant 0 : index
    %32 = vector.load %arg7[%c0_24, %c0_25] : memref<2x32xf32, #tpu.memory_space<vmem>>, vector<2x32xf32>
    tpu.vector_store %arg7[%c0_24, %c0_25], %10 {strides = array<i32>} : memref<2x32xf32, #tpu.memory_space<vmem>>, vector<2x32xf32>,
    %c0_26 = arith.constant 0 : index
    %c0_27 = arith.constant 0 : index
    %33 = vector.load %arg8[%c0_26, %c0_27] : memref<2x32xf32, #tpu.memory_space<vmem>>, vector<2x32xf32>
    tpu.vector_store %arg8[%c0_26, %c0_27], %17 {strides = array<i32>} : memref<2x32xf32, #tpu.memory_space<vmem>>, vector<2x32xf32>,
    %c0_28 = arith.constant 0 : index
    %c0_29 = arith.constant 0 : index
    %34 = vector.load %arg9[%c0_28, %c0_29] : memref<2x32xf32, #tpu.memory_space<vmem>>, vector<2x32xf32>
    tpu.vector_store %arg9[%c0_28, %c0_29], %24 {strides = array<i32>} : memref<2x32xf32, #tpu.memory_space<vmem>>, vector<2x32xf32>,
    %c0_30 = arith.constant 0 : index
    %c0_31 = arith.constant 0 : index
    %35 = vector.load %arg10[%c0_30, %c0_31] : memref<2x32xf32, #tpu.memory_space<vmem>>, vector<2x32xf32>
    tpu.vector_store %arg10[%c0_30, %c0_31], %31 {strides = array<i32>} : memref<2x32xf32, #tpu.memory_space<vmem>>, vector<2x32xf32>,
    %c128 = arith.constant 128 : index
    %c0_32 = arith.constant 0 : index
    %36 = vector.load %arg4[%c128, %c0_32] : memref<328x128xf32, #tpu.memory_space<vmem>>, vector<32x32xf32>
    %cst_33 = arith.constant dense<0.000000e+00> : vector<2x32xf32>
    %37 = tpu.matmul %10, %36, %cst_33 {dimension_numbers = #tpu.dot_dimension_numbers<[1], [0], [0], [1], [0, 0, 1, 1], [], []>} : vector<2x32xf32>, vector<32x32xf32>, vector<2x32xf32> -> vector<2x32xf32>
    %c160 = arith.constant 160 : index
    %c0_34 = arith.constant 0 : index
    %38 = vector.load %arg4[%c160, %c0_34] : memref<328x128xf32, #tpu.memory_space<vmem>>, vector<32x32xf32>
    %cst_35 = arith.constant dense<0.000000e+00> : vector<2x32xf32>
    %39 = tpu.matmul %17, %38, %cst_35 {dimension_numbers = #tpu.dot_dimension_numbers<[1], [0], [0], [1], [0, 0, 1, 1], [], []>} : vector<2x32xf32>, vector<32x32xf32>, vector<2x32xf32> -> vector<2x32xf32>
    %40 = arith.addf %37, %39 : vector<2x32xf32>
    %c4 = arith.constant 4 : index
    %c0_36 = arith.constant 0 : index
    %41 = vector.load %arg5[%c4, %c0_36] : memref<8x128xf32, #tpu.memory_space<vmem>>, vector<1x32xf32>
    %42 = vector.broadcast %41 : vector<1x32xf32> to vector<2x32xf32>
    %43 = arith.addf %40, %42 : vector<2x32xf32>
    %cst_37 = arith.constant 0.000000e+00 : f32
    %44 = vector.broadcast %cst_37 : f32 to vector<2x32xf32>
    %45 = arith.maximumf %43, %44 : vector<2x32xf32>
    %c192 = arith.constant 192 : index
    %c0_38 = arith.constant 0 : index
    %46 = vector.load %arg4[%c192, %c0_38] : memref<328x128xf32, #tpu.memory_space<vmem>>, vector<32x32xf32>
    %cst_39 = arith.constant dense<0.000000e+00> : vector<2x32xf32>
    %47 = tpu.matmul %24, %46, %cst_39 {dimension_numbers = #tpu.dot_dimension_numbers<[1], [0], [0], [1], [0, 0, 1, 1], [], []>} : vector<2x32xf32>, vector<32x32xf32>, vector<2x32xf32> -> vector<2x32xf32>
    %c224 = arith.constant 224 : index
    %c0_40 = arith.constant 0 : index
    %48 = vector.load %arg4[%c224, %c0_40] : memref<328x128xf32, #tpu.memory_space<vmem>>, vector<32x32xf32>
    %cst_41 = arith.constant dense<0.000000e+00> : vector<2x32xf32>
    %49 = tpu.matmul %31, %48, %cst_41 {dimension_numbers = #tpu.dot_dimension_numbers<[1], [0], [0], [1], [0, 0, 1, 1], [], []>} : vector<2x32xf32>, vector<32x32xf32>, vector<2x32xf32> -> vector<2x32xf32>
    %50 = arith.addf %47, %49 : vector<2x32xf32>
    %c5 = arith.constant 5 : index
    %c0_42 = arith.constant 0 : index
    %51 = vector.load %arg5[%c5, %c0_42] : memref<8x128xf32, #tpu.memory_space<vmem>>, vector<1x32xf32>
    %52 = vector.broadcast %51 : vector<1x32xf32> to vector<2x32xf32>
    %53 = arith.addf %50, %52 : vector<2x32xf32>
    %cst_43 = arith.constant 0.000000e+00 : f32
    %54 = vector.broadcast %cst_43 : f32 to vector<2x32xf32>
    %55 = arith.maximumf %53, %54 : vector<2x32xf32>
    %c256 = arith.constant 256 : index
    %c0_44 = arith.constant 0 : index
    %56 = vector.load %arg4[%c256, %c0_44] : memref<328x128xf32, #tpu.memory_space<vmem>>, vector<32x32xf32>
    %cst_45 = arith.constant dense<0.000000e+00> : vector<2x32xf32>
    %57 = tpu.matmul %45, %56, %cst_45 {dimension_numbers = #tpu.dot_dimension_numbers<[1], [0], [0], [1], [0, 0, 1, 1], [], []>} : vector<2x32xf32>, vector<32x32xf32>, vector<2x32xf32> -> vector<2x32xf32>
    %c288 = arith.constant 288 : index
    %c0_46 = arith.constant 0 : index
    %58 = vector.load %arg4[%c288, %c0_46] : memref<328x128xf32, #tpu.memory_space<vmem>>, vector<32x32xf32>
    %cst_47 = arith.constant dense<0.000000e+00> : vector<2x32xf32>
    %59 = tpu.matmul %55, %58, %cst_47 {dimension_numbers = #tpu.dot_dimension_numbers<[1], [0], [0], [1], [0, 0, 1, 1], [], []>} : vector<2x32xf32>, vector<32x32xf32>, vector<2x32xf32> -> vector<2x32xf32>
    %60 = arith.addf %57, %59 : vector<2x32xf32>
    %c6 = arith.constant 6 : index
    %c0_48 = arith.constant 0 : index
    %61 = vector.load %arg5[%c6, %c0_48] : memref<8x128xf32, #tpu.memory_space<vmem>>, vector<1x32xf32>
    %62 = vector.broadcast %61 : vector<1x32xf32> to vector<2x32xf32>
    %63 = arith.addf %60, %62 : vector<2x32xf32>
    %cst_49 = arith.constant 0.000000e+00 : f32
    %64 = vector.broadcast %cst_49 : f32 to vector<2x32xf32>
    %65 = arith.maximumf %63, %64 : vector<2x32xf32>
    %c320 = arith.constant 320 : index
    %c0_50 = arith.constant 0 : index
    %66 = vector.load %arg4[%c320, %c0_50] : memref<328x128xf32, #tpu.memory_space<vmem>>, vector<1x32xf32>
    %67 = vector.broadcast %66 : vector<1x32xf32> to vector<2x32xf32>
    %68 = arith.mulf %65, %67 : vector<2x32xf32>
    %cst_51 = arith.constant dense<0.000000e+00> : vector<2xf32>
    %69 = vector.multi_reduction <add>, %68, %cst_51 [1] : vector<2x32xf32> to vector<2xf32>
    %70 = vector.shape_cast %69 : vector<2xf32> to vector<2x1xf32>
    %c7 = arith.constant 7 : index
    %c0_52 = arith.constant 0 : index
    %71 = vector.load %arg5[%c7, %c0_52] : memref<8x128xf32, #tpu.memory_space<vmem>>, vector<1x1xf32>
    %72 = vector.broadcast %71 : vector<1x1xf32> to vector<2x1xf32>
    %73 = arith.addf %70, %72 : vector<2x1xf32>
    %cst_53 = arith.constant 0.000000e+00 : f32
    %74 = vector.broadcast %cst_53 : f32 to vector<2x1xf32>
    %75 = arith.subf %74, %73 : vector<2x1xf32>
    %76 = math.exp %75 : vector<2x1xf32>
    %cst_54 = arith.constant 1.000000e+00 : f32
    %77 = vector.broadcast %cst_54 : f32 to vector<2x1xf32>
    %78 = arith.addf %77, %76 : vector<2x1xf32>
    %cst_55 = arith.constant 1.000000e+00 : f32
    %79 = vector.broadcast %cst_55 : f32 to vector<2x1xf32>
    %80 = arith.divf %79, %78 : vector<2x1xf32>
    %c0_56 = arith.constant 0 : index
    %c0_57 = arith.constant 0 : index
    %81 = vector.load %arg6[%c0_56, %c0_57] : memref<2x1xf32, #tpu.memory_space<vmem>>, vector<2x1xf32>
    tpu.vector_store %arg6[%c0_56, %c0_57], %80 {strides = array<i32>} : memref<2x1xf32, #tpu.memory_space<vmem>>, vector<2x1xf32>,
    return
  }
}

</mosaic_0001>

<llo_original>
// kernel: tpu_custom_call.1
$region0: #{tpu_custom_call.1}
  #allocation0 [shape = 'u32[]', space=smem, size = 0x4, offset = 0x4, fixed_abs, tag = 'smem constant byte address 0x4 - core index']
  #allocation1 [shape = 'u32[144,128]{1,0:T(1,128)}', space=vmem, size = 0x12000, scoped, tag = 'internal scratch']
  %s0 = inlined_call_operand.hbm [shape: f32[2,32], index: 0, kind: input, shape index: {}]
  %s1 = inlined_call_operand.vmem [shape: f32[2,32], index: 1, kind: input, shape index: {}]
  %s2 = inlined_call_operand.vmem [shape: f32[2,32], index: 2, kind: input, shape index: {}]
  %s3 = inlined_call_operand.vmem [shape: f32[2,32], index: 3, kind: input, shape index: {}]
  %s4 = inlined_call_operand.hbm [shape: f32[328,128], index: 4, kind: input, shape index: {}]
  %s5 = inlined_call_operand.vmem [shape: f32[8,128], index: 5, kind: input, shape index: {}]
  %s6 = inlined_call_operand.vmem [shape: f32[2,1], index: 6, kind: output, shape index: {0}]
  %s7 = inlined_call_operand.hbm [shape: f32[2,32], index: 7, kind: output, shape index: {1}]
  %s8 = inlined_call_operand.hbm [shape: f32[2,32], index: 8, kind: output, shape index: {2}]
  %s9 = inlined_call_operand.hbm [shape: f32[2,32], index: 9, kind: output, shape index: {3}]
  %s10 = inlined_call_operand.hbm [shape: f32[2,32], index: 10, kind: output, shape index: {4}]
  %11 = xla_tuple %s6, %s7, %s8, %s9, %s10
  %s12 = sld [smem:[#allocation0]]
  $region74: #{tpu_custom_call.1} parent=0
    _
  %s14 = ssub.s32 1, %s12
  %s15 = scalar_select 0, %s14, %s12
  $region1: #{tpu_custom_call.1} parent=0
    #allocation2 [shape = 'u8[1024]{0}', space=vmem, size = 0x400, scoped, tag = 'input window, operand 0, single buffered']
    #allocation3 [shape = 's32[1]{0}', space=sflag, size = 0x4, scoped, tag = 'scoped memory for tpu_custom_call.1']
    #allocation4 [shape = 's32[1]{0}', space=sflag, size = 0x4, scoped, tag = 'scoped memory for tpu_custom_call.1']
    #allocation5 [shape = 'u8[167936]{0}', space=vmem, size = 0x29000, scoped, tag = 'input window, operand 4, single buffered']
    #allocation6 [shape = 's32[1]{0}', space=sflag, size = 0x4, scoped, tag = 'scoped memory for tpu_custom_call.1']
    #allocation7 [shape = 'u8[1024]{0}', space=vmem, size = 0x400, scoped, tag = 'output window, operand 1, single buffered']
    #allocation8 [shape = 'u8[1024]{0}', space=vmem, size = 0x400, scoped, tag = 'output window, operand 2, single buffered']
    #allocation9 [shape = 's32[1]{0}', space=sflag, size = 0x4, scoped, tag = 'scoped memory for tpu_custom_call.1']
    #allocation10 [shape = 'u8[1024]{0}', space=vmem, size = 0x400, scoped, tag = 'output window, operand 3, single buffered']
    #allocation11 [shape = 'u8[1024]{0}', space=vmem, size = 0x400, scoped, tag = 'output window, operand 4, single buffered']
    #allocation12 [shape = 's32[1]{0}', space=sflag, size = 0x4, scoped, tag = 'scoped memory for tpu_custom_call.1']
    %16 = vsyncpa [#allocation3], 0
    %17 = vsyncpa [#allocation6], 0
    %18 = vsyncpa [#allocation4], 0
    %19 = vsyncpa [#allocation9], 0
    %20 = vsyncpa [#allocation12], 0
    // Predicated region
    $region2: #{tpu_custom_call.1} parent=1 // pred_check
      _
    $region3: #{tpu_custom_call.1} parent=1 // pred_check_branch
      %22 = sbr.rel (0) target = $region5
    $region4: #{tpu_custom_call.1} parent=1 // pred_region
      %s24 = ssub.s32 32, 32
      %25 = vsyncadd [#allocation3], %s24
      %s27 = sshll.u32 [#allocation2], 4
      %s28 = int_to_ptr.vmem [resolvable:$true] %s27
      %30 = dma.hbm_to_vmem [thread:$0]  %s0, 32, %s28, [#allocation3]
    $region5: #{tpu_custom_call.1} parent=1 // pred_fallthru
      _
    // Predicated region
    $region6: #{tpu_custom_call.1} parent=1 // pred_check
      _
    $region7: #{tpu_custom_call.1} parent=1 // pred_check_branch
      %32 = sbr.rel (0) target = $region9
    $region8: #{tpu_custom_call.1} parent=1 // pred_region
      _
    $region9: #{tpu_custom_call.1} parent=1 // pred_fallthru
      _
    // Predicated region
    $region10: #{tpu_custom_call.1} parent=1 // pred_check
      _
    $region11: #{tpu_custom_call.1} parent=1 // pred_check_branch
      %34 = sbr.rel (0) target = $region13
    $region12: #{tpu_custom_call.1} parent=1 // pred_region
      _
    $region13: #{tpu_custom_call.1} parent=1 // pred_fallthru
      _
    // Predicated region
    $region14: #{tpu_custom_call.1} parent=1 // pred_check
      _
    $region15: #{tpu_custom_call.1} parent=1 // pred_check_branch
      %36 = sbr.rel (0) target = $region17
    $region16: #{tpu_custom_call.1} parent=1 // pred_region
      _
    $region17: #{tpu_custom_call.1} parent=1 // pred_fallthru
      _
    // Predicated region
    $region18: #{tpu_custom_call.1} parent=1 // pred_check
      _
    $region19: #{tpu_custom_call.1} parent=1 // pred_check_branch
      %38 = sbr.rel (0) target = $region21
    $region20: #{tpu_custom_call.1} parent=1 // pred_region
      %s40 = ssub.s32 5248, 5248
      %41 = vsyncadd [#allocation6], %s40
      %s42 = sshll.u32 [#allocation5], 4
      %s43 = int_to_ptr.vmem [resolvable:$true] %s42
      %48 = dma.hbm_to_vmem [thread:$0]  %s4, 5248, %s43, [#allocation6], 128, 128, 8
    $region21: #{tpu_custom_call.1} parent=1 // pred_fallthru
      _
    // Predicated region
    $region22: #{tpu_custom_call.1} parent=1 // pred_check
      _
    $region23: #{tpu_custom_call.1} parent=1 // pred_check_branch
      %50 = sbr.rel (0) target = $region25
    $region24: #{tpu_custom_call.1} parent=1 // pred_region
      _
    $region25: #{tpu_custom_call.1} parent=1 // pred_fallthru
      _
    // Predicated region
    $region26: #{tpu_custom_call.1} parent=1 // pred_check
      _
    $region27: #{tpu_custom_call.1} parent=1 // pred_check_branch
      %52 = sbr.rel (0) target = $region29
    $region28: #{tpu_custom_call.1} parent=1 // pred_region
      %53 = dma.done [#allocation3], 32
    $region29: #{tpu_custom_call.1} parent=1 // pred_fallthru
      _
    // Predicated region
    $region30: #{tpu_custom_call.1} parent=1 // pred_check
      _
    $region31: #{tpu_custom_call.1} parent=1 // pred_check_branch
      %55 = sbr.rel (0) target = $region33
    $region32: #{tpu_custom_call.1} parent=1 // pred_region
      %56 = dma.done [#allocation6], 5248
    $region33: #{tpu_custom_call.1} parent=1 // pred_fallthru
      _
    %v57 = vld [vmem:[#allocation2] sm:$0x3]
    %v58 = vld [vmem:[%s1] sm:$0x3]
    %v59 = vld [vmem:[%s2] sm:$0x3]
    %v60 = vld [vmem:[%s3] sm:$0x3]
    %v61 = vld [vmem:[#allocation5] sm:$0xff]
    %v62 = vld [vmem:[#allocation5 + $0x8] sm:$0xff]
    %v63 = vld [vmem:[#allocation5 + $0x10] sm:$0xff]
    %v64 = vld [vmem:[#allocation5 + $0x18] sm:$0xff]
    %v65 = vld [vmem:[%s5] sm:$0x1]
    %v66 = vlaneseq
    %v67 = vshrl.u32 %v66, 7
    %v68 = vsub.s32 0, %v67
    %v69 = vrot.slane %v65, %v68
    %vm70 = vcmask 261120
    %v72 = vsel %vm70, %v57, 0
    %74 = vmatprep.subr.mxu0 0.0
    %75 = vmatpush1.msra.mxu0 %v61
    %76 = vmatprep.subr.mxu0 0.0
    %77 = vmatpush1.msra.mxu0 %v62
    %78 = vmatprep.subr.mxu0 0.0
    %79 = vmatpush1.msra.mxu0 %v63
    %80 = vmatprep.subr.mxu0 0.0
    %81 = vmatpush1.msra.mxu0 %v64
    %82 = vmatprep.subr.mxu0 0.0
    %83 = vmatpush1.msra.mxu0 0.0
    %84 = vmatprep.subr.mxu0 0.0
    %85 = vmatpush1.msra.mxu0 0.0
    %86 = vmatprep.subr.mxu0 0.0
    %87 = vmatpush1.msra.mxu0 0.0
    %88 = vmatprep.subr.mxu0 0.0
    %89 = vmatpush1.msra.mxu0 0.0
    %90 = vmatprep.subr.mxu0 0.0
    %91 = vmatpush1.msra.mxu0 0.0
    %92 = vmatprep.subr.mxu0 0.0
    %93 = vmatpush1.msra.mxu0 0.0
    %94 = vmatprep.subr.mxu0 0.0
    %95 = vmatpush1.msra.mxu0 0.0
    %96 = vmatprep.subr.mxu0 0.0
    %97 = vmatpush1.msra.mxu0 0.0
    %98 = vmatprep.subr.mxu0 0.0
    %99 = vmatpush1.msra.mxu0 0.0
    %100 = vmatprep.subr.mxu0 0.0
    %101 = vmatpush1.msra.mxu0 0.0
    %102 = vmatprep.subr.mxu0 0.0
    %103 = vmatpush1.msra.mxu0 0.0
    %104 = vmatprep.subr.mxu0 0.0
    %105 = vmatpush1.msra.mxu0 0.0
    %106 = vmatprep.subr.mxu0 0.0
    %107 = vmatpush1.msra.mxu0 0.0
    %108 = vmatprep.subr.mxu0 0.0
    %109 = vmatpush1.msra.mxu0 0.0
    %110 = vmatprep.subr.mxu0 0.0
    %111 = vmatpush1.msra.mxu0 0.0
    %112 = vmatprep.subr.mxu0 0.0
    %113 = vmatpush1.msra.mxu0 0.0
    %114 = vmatprep.subr.mxu0 0.0
    %115 = vmatpush1.msra.mxu0 0.0
    %116 = vmatprep.subr.mxu0 0.0
    %117 = vmatpush1.msra.mxu0 0.0
    %118 = vmatprep.subr.mxu0 0.0
    %119 = vmatpush1.msra.mxu0 0.0
    %120 = vmatprep.subr.mxu0 0.0
    %121 = vmatpush1.msra.mxu0 0.0
    %122 = vmatprep.subr.mxu0 0.0
    %123 = vmatpush1.msra.mxu0 0.0
    %124 = vmatprep.subr.mxu0 0.0
    %125 = vmatpush1.msra.mxu0 0.0
    %126 = vmatprep.subr.mxu0 0.0
    %127 = vmatpush1.msra.mxu0 0.0
    %128 = vmatprep.subr.mxu0 0.0
    %129 = vmatpush1.msra.mxu0 0.0
    %130 = vmatprep.subr.mxu0 0.0
    %131 = vmatpush1.msra.mxu0 0.0
    %132 = vmatprep.subr.mxu0 0.0
    %133 = vmatpush1.msra.mxu0 0.0
    %134 = vmatprep.subr.mxu0 0.0
    %135 = vmatpush1.msra.mxu0 0.0
    %136 = vmatprep.subr.mxu0 0.0
    %137 = vmatpush1.msra.mxu0 0.0
    %138 = vmatprep.mubr.f32.mxu0 0.0
    %139 = vmatmul.mubr.f32.gmra.mrb[0].mxu0 %v72
    %v140 = vpop.f32.mrb[0].mxu0
    %v141 = vadd.f32 %v69, %v140
    %v142 = vpop.f32.mrb[0].mxu0
    %143 = vdwg.mxu0
    %v144 = vmax.f32 %v141, 0.0
    %v145 = vld [vmem:[#allocation5 + $0x20] sm:$0xff]
    %v146 = vld [vmem:[#allocation5 + $0x28] sm:$0xff]
    %v147 = vld [vmem:[#allocation5 + $0x30] sm:$0xff]
    %v148 = vld [vmem:[#allocation5 + $0x38] sm:$0xff]
    %v149 = vld [vmem:[%s5 + $0x1] sm:$0x1]
    %v150 = vlaneseq
    %v151 = vshrl.u32 %v150, 7
    %v152 = vsub.s32 0, %v151
    %v153 = vrot.slane %v149, %v152
    %v155 = vsel %vm70, %v58, 0
    %157 = vmatprep.subr.mxu0 0.0
    %158 = vmatpush1.msra.mxu0 %v145
    %159 = vmatprep.subr.mxu0 0.0
    %160 = vmatpush1.msra.mxu0 %v146
    %161 = vmatprep.subr.mxu0 0.0
    %162 = vmatpush1.msra.mxu0 %v147
    %163 = vmatprep.subr.mxu0 0.0
    %164 = vmatpush1.msra.mxu0 %v148
    %165 = vmatprep.subr.mxu0 0.0
    %166 = vmatpush1.msra.mxu0 0.0
    %167 = vmatprep.subr.mxu0 0.0
    %168 = vmatpush1.msra.mxu0 0.0
    %169 = vmatprep.subr.mxu0 0.0
    %170 = vmatpush1.msra.mxu0 0.0
    %171 = vmatprep.subr.mxu0 0.0
    %172 = vmatpush1.msra.mxu0 0.0
    %173 = vmatprep.subr.mxu0 0.0
    %174 = vmatpush1.msra.mxu0 0.0
    %175 = vmatprep.subr.mxu0 0.0
    %176 = vmatpush1.msra.mxu0 0.0
    %177 = vmatprep.subr.mxu0 0.0
    %178 = vmatpush1.msra.mxu0 0.0
    %179 = vmatprep.subr.mxu0 0.0
    %180 = vmatpush1.msra.mxu0 0.0
    %181 = vmatprep.subr.mxu0 0.0
    %182 = vmatpush1.msra.mxu0 0.0
    %183 = vmatprep.subr.mxu0 0.0
    %184 = vmatpush1.msra.mxu0 0.0
    %185 = vmatprep.subr.mxu0 0.0
    %186 = vmatpush1.msra.mxu0 0.0
    %187 = vmatprep.subr.mxu0 0.0
    %188 = vmatpush1.msra.mxu0 0.0
    %189 = vmatprep.subr.mxu0 0.0
    %190 = vmatpush1.msra.mxu0 0.0
    %191 = vmatprep.subr.mxu0 0.0
    %192 = vmatpush1.msra.mxu0 0.0
    %193 = vmatprep.subr.mxu0 0.0
    %194 = vmatpush1.msra.mxu0 0.0
    %195 = vmatprep.subr.mxu0 0.0
    %196 = vmatpush1.msra.mxu0 0.0
    %197 = vmatprep.subr.mxu0 0.0
    %198 = vmatpush1.msra.mxu0 0.0
    %199 = vmatprep.subr.mxu0 0.0
    %200 = vmatpush1.msra.mxu0 0.0
    %201 = vmatprep.subr.mxu0 0.0
    %202 = vmatpush1.msra.mxu0 0.0
    %203 = vmatprep.subr.mxu0 0.0
    %204 = vmatpush1.msra.mxu0 0.0
    %205 = vmatprep.subr.mxu0 0.0
    %206 = vmatpush1.msra.mxu0 0.0
    %207 = vmatprep.subr.mxu0 0.0
    %208 = vmatpush1.msra.mxu0 0.0
    %209 = vmatprep.subr.mxu0 0.0
    %210 = vmatpush1.msra.mxu0 0.0
    %211 = vmatprep.subr.mxu0 0.0
    %212 = vmatpush1.msra.mxu0 0.0
    %213 = vmatprep.subr.mxu0 0.0
    %214 = vmatpush1.msra.mxu0 0.0
    %215 = vmatprep.subr.mxu0 0.0
    %216 = vmatpush1.msra.mxu0 0.0
    %217 = vmatprep.subr.mxu0 0.0
    %218 = vmatpush1.msra.mxu0 0.0
    %219 = vmatprep.subr.mxu0 0.0
    %220 = vmatpush1.msra.mxu0 0.0
    %221 = vmatprep.mubr.f32.mxu0 0.0
    %222 = vmatmul.mubr.f32.gmra.mrb[0].mxu0 %v155
    %v223 = vpop.f32.mrb[0].mxu0
    %v224 = vadd.f32 %v153, %v223
    %v225 = vpop.f32.mrb[0].mxu0
    %226 = vdwg.mxu0
    %v227 = vmax.f32 %v224, 0.0
    %v228 = vld [vmem:[#allocation5 + $0x40] sm:$0xff]
    %v229 = vld [vmem:[#allocation5 + $0x48] sm:$0xff]
    %v230 = vld [vmem:[#allocation5 + $0x50] sm:$0xff]
    %v231 = vld [vmem:[#allocation5 + $0x58] sm:$0xff]
    %v232 = vld [vmem:[%s5 + $0x2] sm:$0x1]
    %v233 = vlaneseq
    %v234 = vshrl.u32 %v233, 7
    %v235 = vsub.s32 0, %v234
    %v236 = vrot.slane %v232, %v235
    %v238 = vsel %vm70, %v59, 0
    %240 = vmatprep.subr.mxu0 0.0
    %241 = vmatpush1.msra.mxu0 %v228
    %242 = vmatprep.subr.mxu0 0.0
    %243 = vmatpush1.msra.mxu0 %v229
    %244 = vmatprep.subr.mxu0 0.0
    %245 = vmatpush1.msra.mxu0 %v230
    %246 = vmatprep.subr.mxu0 0.0
    %247 = vmatpush1.msra.mxu0 %v231
    %248 = vmatprep.subr.mxu0 0.0
    %249 = vmatpush1.msra.mxu0 0.0
    %250 = vmatprep.subr.mxu0 0.0
    %251 = vmatpush1.msra.mxu0 0.0
    %252 = vmatprep.subr.mxu0 0.0
    %253 = vmatpush1.msra.mxu0 0.0
    %254 = vmatprep.subr.mxu0 0.0
    %255 = vmatpush1.msra.mxu0 0.0
    %256 = vmatprep.subr.mxu0 0.0
    %257 = vmatpush1.msra.mxu0 0.0
    %258 = vmatprep.subr.mxu0 0.0
    %259 = vmatpush1.msra.mxu0 0.0
    %260 = vmatprep.subr.mxu0 0.0
    %261 = vmatpush1.msra.mxu0 0.0
    %262 = vmatprep.subr.mxu0 0.0
    %263 = vmatpush1.msra.mxu0 0.0
    %264 = vmatprep.subr.mxu0 0.0
    %265 = vmatpush1.msra.mxu0 0.0
    %266 = vmatprep.subr.mxu0 0.0
    %267 = vmatpush1.msra.mxu0 0.0
    %268 = vmatprep.subr.mxu0 0.0
    %269 = vmatpush1.msra.mxu0 0.0
    %270 = vmatprep.subr.mxu0 0.0
    %271 = vmatpush1.msra.mxu0 0.0
    %272 = vmatprep.subr.mxu0 0.0
    %273 = vmatpush1.msra.mxu0 0.0
    %274 = vmatprep.subr.mxu0 0.0
    %275 = vmatpush1.msra.mxu0 0.0
    %276 = vmatprep.subr.mxu0 0.0
    %277 = vmatpush1.msra.mxu0 0.0
    %278 = vmatprep.subr.mxu0 0.0
    %279 = vmatpush1.msra.mxu0 0.0
    %280 = vmatprep.subr.mxu0 0.0
    %281 = vmatpush1.msra.mxu0 0.0
    %282 = vmatprep.subr.mxu0 0.0
    %283 = vmatpush1.msra.mxu0 0.0
    %284 = vmatprep.subr.mxu0 0.0
    %285 = vmatpush1.msra.mxu0 0.0
    %286 = vmatprep.subr.mxu0 0.0
    %287 = vmatpush1.msra.mxu0 0.0
    %288 = vmatprep.subr.mxu0 0.0
    %289 = vmatpush1.msra.mxu0 0.0
    %290 = vmatprep.subr.mxu0 0.0
    %291 = vmatpush1.msra.mxu0 0.0
    %292 = vmatprep.subr.mxu0 0.0
    %293 = vmatpush1.msra.mxu0 0.0
    %294 = vmatprep.subr.mxu0 0.0
    %295 = vmatpush1.msra.mxu0 0.0
    %296 = vmatprep.subr.mxu0 0.0
    %297 = vmatpush1.msra.mxu0 0.0
    %298 = vmatprep.subr.mxu0 0.0
    %299 = vmatpush1.msra.mxu0 0.0
    %300 = vmatprep.subr.mxu0 0.0
    %301 = vmatpush1.msra.mxu0 0.0
    %302 = vmatprep.subr.mxu0 0.0
    %303 = vmatpush1.msra.mxu0 0.0
    %304 = vmatprep.mubr.f32.mxu0 0.0
    %305 = vmatmul.mubr.f32.gmra.mrb[0].mxu0 %v238
    %v306 = vpop.f32.mrb[0].mxu0
    %v307 = vadd.f32 %v236, %v306
    %v308 = vpop.f32.mrb[0].mxu0
    %309 = vdwg.mxu0
    %v310 = vmax.f32 %v307, 0.0
    %v311 = vld [vmem:[#allocation5 + $0x60] sm:$0xff]
    %v312 = vld [vmem:[#allocation5 + $0x68] sm:$0xff]
    %v313 = vld [vmem:[#allocation5 + $0x70] sm:$0xff]
    %v314 = vld [vmem:[#allocation5 + $0x78] sm:$0xff]
    %v315 = vld [vmem:[%s5 + $0x3] sm:$0x1]
    %v316 = vlaneseq
    %v317 = vshrl.u32 %v316, 7
    %v318 = vsub.s32 0, %v317
    %v319 = vrot.slane %v315, %v318
    %v321 = vsel %vm70, %v60, 0
    %323 = vmatprep.subr.mxu0 0.0
    %324 = vmatpush1.msra.mxu0 %v311
    %325 = vmatprep.subr.mxu0 0.0
    %326 = vmatpush1.msra.mxu0 %v312
    %327 = vmatprep.subr.mxu0 0.0
    %328 = vmatpush1.msra.mxu0 %v313
    %329 = vmatprep.subr.mxu0 0.0
    %330 = vmatpush1.msra.mxu0 %v314
    %331 = vmatprep.subr.mxu0 0.0
    %332 = vmatpush1.msra.mxu0 0.0
    %333 = vmatprep.subr.mxu0 0.0
    %334 = vmatpush1.msra.mxu0 0.0
    %335 = vmatprep.subr.mxu0 0.0
    %336 = vmatpush1.msra.mxu0 0.0
    %337 = vmatprep.subr.mxu0 0.0
    %338 = vmatpush1.msra.mxu0 0.0
    %339 = vmatprep.subr.mxu0 0.0
    %340 = vmatpush1.msra.mxu0 0.0
    %341 = vmatprep.subr.mxu0 0.0
    %342 = vmatpush1.msra.mxu0 0.0
    %343 = vmatprep.subr.mxu0 0.0
    %344 = vmatpush1.msra.mxu0 0.0
    %345 = vmatprep.subr.mxu0 0.0
    %346 = vmatpush1.msra.mxu0 0.0
    %347 = vmatprep.subr.mxu0 0.0
    %348 = vmatpush1.msra.mxu0 0.0
    %349 = vmatprep.subr.mxu0 0.0
    %350 = vmatpush1.msra.mxu0 0.0
    %351 = vmatprep.subr.mxu0 0.0
    %352 = vmatpush1.msra.mxu0 0.0
    %353 = vmatprep.subr.mxu0 0.0
    %354 = vmatpush1.msra.mxu0 0.0
    %355 = vmatprep.subr.mxu0 0.0
    %356 = vmatpush1.msra.mxu0 0.0
    %357 = vmatprep.subr.mxu0 0.0
    %358 = vmatpush1.msra.mxu0 0.0
    %359 = vmatprep.subr.mxu0 0.0
    %360 = vmatpush1.msra.mxu0 0.0
    %361 = vmatprep.subr.mxu0 0.0
    %362 = vmatpush1.msra.mxu0 0.0
    %363 = vmatprep.subr.mxu0 0.0
    %364 = vmatpush1.msra.mxu0 0.0
    %365 = vmatprep.subr.mxu0 0.0
    %366 = vmatpush1.msra.mxu0 0.0
    %367 = vmatprep.subr.mxu0 0.0
    %368 = vmatpush1.msra.mxu0 0.0
    %369 = vmatprep.subr.mxu0 0.0
    %370 = vmatpush1.msra.mxu0 0.0
    %371 = vmatprep.subr.mxu0 0.0
    %372 = vmatpush1.msra.mxu0 0.0
    %373 = vmatprep.subr.mxu0 0.0
    %374 = vmatpush1.msra.mxu0 0.0
    %375 = vmatprep.subr.mxu0 0.0
    %376 = vmatpush1.msra.mxu0 0.0
    %377 = vmatprep.subr.mxu0 0.0
    %378 = vmatpush1.msra.mxu0 0.0
    %379 = vmatprep.subr.mxu0 0.0
    %380 = vmatpush1.msra.mxu0 0.0
    %381 = vmatprep.subr.mxu0 0.0
    %382 = vmatpush1.msra.mxu0 0.0
    %383 = vmatprep.subr.mxu0 0.0
    %384 = vmatpush1.msra.mxu0 0.0
    %385 = vmatprep.subr.mxu0 0.0
    %386 = vmatpush1.msra.mxu0 0.0
    %387 = vmatprep.mubr.f32.mxu0 0.0
    %388 = vmatmul.mubr.f32.gmra.mrb[0].mxu0 %v321
    %v389 = vpop.f32.mrb[0].mxu0
    %v390 = vadd.f32 %v319, %v389
    %v391 = vpop.f32.mrb[0].mxu0
    %392 = vdwg.mxu0
    %v393 = vmax.f32 %v390, 0.0
    %vm394 = vcmask 254976
    %395 = vst.msk [vmem:[#allocation7] sm:$0x3] %vm394, %v144
    %396 = vst.msk [vmem:[#allocation8] sm:$0x3] %vm394, %v227
    %397 = vst.msk [vmem:[#allocation10] sm:$0x3] %vm394, %v310
    %398 = vst.msk [vmem:[#allocation11] sm:$0x3] %vm394, %v393
    %v399 = vld [vmem:[#allocation5 + $0x80] sm:$0xff]
    %v400 = vld [vmem:[#allocation5 + $0x88] sm:$0xff]
    %v401 = vld [vmem:[#allocation5 + $0x90] sm:$0xff]
    %v402 = vld [vmem:[#allocation5 + $0x98] sm:$0xff]
    %v403 = vld [vmem:[#allocation5 + $0xa0] sm:$0xff]
    %v404 = vld [vmem:[#allocation5 + $0xa8] sm:$0xff]
    %v405 = vld [vmem:[#allocation5 + $0xb0] sm:$0xff]
    %v406 = vld [vmem:[#allocation5 + $0xb8] sm:$0xff]
    %v408 = vsel %vm70, %v227, 0
    %410 = vmatprep.subr.mxu0 0.0
    %411 = vmatpush1.msra.mxu0 %v403
    %412 = vmatprep.subr.mxu0 0.0
    %413 = vmatpush1.msra.mxu0 %v404
    %414 = vmatprep.subr.mxu0 0.0
    %415 = vmatpush1.msra.mxu0 %v405
    %416 = vmatprep.subr.mxu0 0.0
    %417 = vmatpush1.msra.mxu0 %v406
    %418 = vmatprep.subr.mxu0 0.0
    %419 = vmatpush1.msra.mxu0 0.0
    %420 = vmatprep.subr.mxu0 0.0
    %421 = vmatpush1.msra.mxu0 0.0
    %422 = vmatprep.subr.mxu0 0.0
    %423 = vmatpush1.msra.mxu0 0.0
    %424 = vmatprep.subr.mxu0 0.0
    %425 = vmatpush1.msra.mxu0 0.0
    %426 = vmatprep.subr.mxu0 0.0
    %427 = vmatpush1.msra.mxu0 0.0
    %428 = vmatprep.subr.mxu0 0.0
    %429 = vmatpush1.msra.mxu0 0.0
    %430 = vmatprep.subr.mxu0 0.0
    %431 = vmatpush1.msra.mxu0 0.0
    %432 = vmatprep.subr.mxu0 0.0
    %433 = vmatpush1.msra.mxu0 0.0
    %434 = vmatprep.subr.mxu0 0.0
    %435 = vmatpush1.msra.mxu0 0.0
    %436 = vmatprep.subr.mxu0 0.0
    %437 = vmatpush1.msra.mxu0 0.0
    %438 = vmatprep.subr.mxu0 0.0
    %439 = vmatpush1.msra.mxu0 0.0
    %440 = vmatprep.subr.mxu0 0.0
    %441 = vmatpush1.msra.mxu0 0.0
    %442 = vmatprep.subr.mxu0 0.0
    %443 = vmatpush1.msra.mxu0 0.0
    %444 = vmatprep.subr.mxu0 0.0
    %445 = vmatpush1.msra.mxu0 0.0
    %446 = vmatprep.subr.mxu0 0.0
    %447 = vmatpush1.msra.mxu0 0.0
    %448 = vmatprep.subr.mxu0 0.0
    %449 = vmatpush1.msra.mxu0 0.0
    %450 = vmatprep.subr.mxu0 0.0
    %451 = vmatpush1.msra.mxu0 0.0
    %452 = vmatprep.subr.mxu0 0.0
    %453 = vmatpush1.msra.mxu0 0.0
    %454 = vmatprep.subr.mxu0 0.0
    %455 = vmatpush1.msra.mxu0 0.0
    %456 = vmatprep.subr.mxu0 0.0
    %457 = vmatpush1.msra.mxu0 0.0
    %458 = vmatprep.subr.mxu0 0.0
    %459 = vmatpush1.msra.mxu0 0.0
    %460 = vmatprep.subr.mxu0 0.0
    %461 = vmatpush1.msra.mxu0 0.0
    %462 = vmatprep.subr.mxu0 0.0
    %463 = vmatpush1.msra.mxu0 0.0
    %464 = vmatprep.subr.mxu0 0.0
    %465 = vmatpush1.msra.mxu0 0.0
    %466 = vmatprep.subr.mxu0 0.0
    %467 = vmatpush1.msra.mxu0 0.0
    %468 = vmatprep.subr.mxu0 0.0
    %469 = vmatpush1.msra.mxu0 0.0
    %470 = vmatprep.subr.mxu0 0.0
    %471 = vmatpush1.msra.mxu0 0.0
    %472 = vmatprep.subr.mxu0 0.0
    %473 = vmatpush1.msra.mxu0 0.0
    %474 = vmatprep.mubr.f32.mxu0 0.0
    %475 = vmatmul.mubr.f32.gmra.mrb[0].mxu0 %v408
    %v476 = vpop.f32.mrb[0].mxu0
    %v477 = vadd.f32 0.0, %v476
    %v478 = vpop.f32.mrb[0].mxu0
    %479 = vdwg.mxu0
    %v481 = vsel %vm70, %v144, 0
    %483 = vmatprep.subr.mxu0 0.0
    %484 = vmatpush1.msra.mxu0 %v399
    %485 = vmatprep.subr.mxu0 0.0
    %486 = vmatpush1.msra.mxu0 %v400
    %487 = vmatprep.subr.mxu0 0.0
    %488 = vmatpush1.msra.mxu0 %v401
    %489 = vmatprep.subr.mxu0 0.0
    %490 = vmatpush1.msra.mxu0 %v402
    %491 = vmatprep.subr.mxu0 0.0
    %492 = vmatpush1.msra.mxu0 0.0
    %493 = vmatprep.subr.mxu0 0.0
    %494 = vmatpush1.msra.mxu0 0.0
    %495 = vmatprep.subr.mxu0 0.0
    %496 = vmatpush1.msra.mxu0 0.0
    %497 = vmatprep.subr.mxu0 0.0
    %498 = vmatpush1.msra.mxu0 0.0
    %499 = vmatprep.subr.mxu0 0.0
    %500 = vmatpush1.msra.mxu0 0.0
    %501 = vmatprep.subr.mxu0 0.0
    %502 = vmatpush1.msra.mxu0 0.0
    %503 = vmatprep.subr.mxu0 0.0
    %504 = vmatpush1.msra.mxu0 0.0
    %505 = vmatprep.subr.mxu0 0.0
    %506 = vmatpush1.msra.mxu0 0.0
    %507 = vmatprep.subr.mxu0 0.0
    %508 = vmatpush1.msra.mxu0 0.0
    %509 = vmatprep.subr.mxu0 0.0
    %510 = vmatpush1.msra.mxu0 0.0
    %511 = vmatprep.subr.mxu0 0.0
    %512 = vmatpush1.msra.mxu0 0.0
    %513 = vmatprep.subr.mxu0 0.0
    %514 = vmatpush1.msra.mxu0 0.0
    %515 = vmatprep.subr.mxu0 0.0
    %516 = vmatpush1.msra.mxu0 0.0
    %517 = vmatprep.subr.mxu0 0.0
    %518 = vmatpush1.msra.mxu0 0.0
    %519 = vmatprep.subr.mxu0 0.0
    %520 = vmatpush1.msra.mxu0 0.0
    %521 = vmatprep.subr.mxu0 0.0
    %522 = vmatpush1.msra.mxu0 0.0
    %523 = vmatprep.subr.mxu0 0.0
    %524 = vmatpush1.msra.mxu0 0.0
    %525 = vmatprep.subr.mxu0 0.0
    %526 = vmatpush1.msra.mxu0 0.0
    %527 = vmatprep.subr.mxu0 0.0
    %528 = vmatpush1.msra.mxu0 0.0
    %529 = vmatprep.subr.mxu0 0.0
    %530 = vmatpush1.msra.mxu0 0.0
    %531 = vmatprep.subr.mxu0 0.0
    %532 = vmatpush1.msra.mxu0 0.0
    %533 = vmatprep.subr.mxu0 0.0
    %534 = vmatpush1.msra.mxu0 0.0
    %535 = vmatprep.subr.mxu0 0.0
    %536 = vmatpush1.msra.mxu0 0.0
    %537 = vmatprep.subr.mxu0 0.0
    %538 = vmatpush1.msra.mxu0 0.0
    %539 = vmatprep.subr.mxu0 0.0
    %540 = vmatpush1.msra.mxu0 0.0
    %541 = vmatprep.subr.mxu0 0.0
    %542 = vmatpush1.msra.mxu0 0.0
    %543 = vmatprep.subr.mxu0 0.0
    %544 = vmatpush1.msra.mxu0 0.0
    %545 = vmatprep.subr.mxu0 0.0
    %546 = vmatpush1.msra.mxu0 0.0
    %547 = vmatprep.mubr.f32.mxu0 0.0
    %548 = vmatmul.mubr.f32.gmra.mrb[0].mxu0 %v481
    %v549 = vpop.f32.mrb[0].mxu0
    %v550 = vadd.f32 %v477, %v549
    %v551 = vpop.f32.mrb[0].mxu0
    %552 = vdwg.mxu0
    %v553 = vld [vmem:[%s5 + $0x4] sm:$0x1]
    %v554 = vlaneseq
    %v555 = vshrl.u32 %v554, 7
    %v556 = vsub.s32 0, %v555
    %v557 = vrot.slane %v553, %v556
    %v558 = vadd.f32 %v550, %v557
    %v559 = vmax.f32 %v558, 0.0
    %v560 = vld [vmem:[#allocation5 + $0xc0] sm:$0xff]
    %v561 = vld [vmem:[#allocation5 + $0xc8] sm:$0xff]
    %v562 = vld [vmem:[#allocation5 + $0xd0] sm:$0xff]
    %v563 = vld [vmem:[#allocation5 + $0xd8] sm:$0xff]
    %v564 = vld [vmem:[#allocation5 + $0xe0] sm:$0xff]
    %v565 = vld [vmem:[#allocation5 + $0xe8] sm:$0xff]
    %v566 = vld [vmem:[#allocation5 + $0xf0] sm:$0xff]
    %v567 = vld [vmem:[#allocation5 + $0xf8] sm:$0xff]
    %v569 = vsel %vm70, %v393, 0
    %571 = vmatprep.subr.mxu0 0.0
    %572 = vmatpush1.msra.mxu0 %v564
    %573 = vmatprep.subr.mxu0 0.0
    %574 = vmatpush1.msra.mxu0 %v565
    %575 = vmatprep.subr.mxu0 0.0
    %576 = vmatpush1.msra.mxu0 %v566
    %577 = vmatprep.subr.mxu0 0.0
    %578 = vmatpush1.msra.mxu0 %v567
    %579 = vmatprep.subr.mxu0 0.0
    %580 = vmatpush1.msra.mxu0 0.0
    %581 = vmatprep.subr.mxu0 0.0
    %582 = vmatpush1.msra.mxu0 0.0
    %583 = vmatprep.subr.mxu0 0.0
    %584 = vmatpush1.msra.mxu0 0.0
    %585 = vmatprep.subr.mxu0 0.0
    %586 = vmatpush1.msra.mxu0 0.0
    %587 = vmatprep.subr.mxu0 0.0
    %588 = vmatpush1.msra.mxu0 0.0
    %589 = vmatprep.subr.mxu0 0.0
    %590 = vmatpush1.msra.mxu0 0.0
    %591 = vmatprep.subr.mxu0 0.0
    %592 = vmatpush1.msra.mxu0 0.0
    %593 = vmatprep.subr.mxu0 0.0
    %594 = vmatpush1.msra.mxu0 0.0
    %595 = vmatprep.subr.mxu0 0.0
    %596 = vmatpush1.msra.mxu0 0.0
    %597 = vmatprep.subr.mxu0 0.0
    %598 = vmatpush1.msra.mxu0 0.0
    %599 = vmatprep.subr.mxu0 0.0
    %600 = vmatpush1.msra.mxu0 0.0
    %601 = vmatprep.subr.mxu0 0.0
    %602 = vmatpush1.msra.mxu0 0.0
    %603 = vmatprep.subr.mxu0 0.0
    %604 = vmatpush1.msra.mxu0 0.0
    %605 = vmatprep.subr.mxu0 0.0
    %606 = vmatpush1.msra.mxu0 0.0
    %607 = vmatprep.subr.mxu0 0.0
    %608 = vmatpush1.msra.mxu0 0.0
    %609 = vmatprep.subr.mxu0 0.0
    %610 = vmatpush1.msra.mxu0 0.0
    %611 = vmatprep.subr.mxu0 0.0
    %612 = vmatpush1.msra.mxu0 0.0
    %613 = vmatprep.subr.mxu0 0.0
    %614 = vmatpush1.msra.mxu0 0.0
    %615 = vmatprep.subr.mxu0 0.0
    %616 = vmatpush1.msra.mxu0 0.0
    %617 = vmatprep.subr.mxu0 0.0
    %618 = vmatpush1.msra.mxu0 0.0
    %619 = vmatprep.subr.mxu0 0.0
    %620 = vmatpush1.msra.mxu0 0.0
    %621 = vmatprep.subr.mxu0 0.0
    %622 = vmatpush1.msra.mxu0 0.0
    %623 = vmatprep.subr.mxu0 0.0
    %624 = vmatpush1.msra.mxu0 0.0
    %625 = vmatprep.subr.mxu0 0.0
    %626 = vmatpush1.msra.mxu0 0.0
    %627 = vmatprep.subr.mxu0 0.0
    %628 = vmatpush1.msra.mxu0 0.0
    %629 = vmatprep.subr.mxu0 0.0
    %630 = vmatpush1.msra.mxu0 0.0
    %631 = vmatprep.subr.mxu0 0.0
    %632 = vmatpush1.msra.mxu0 0.0
    %633 = vmatprep.subr.mxu0 0.0
    %634 = vmatpush1.msra.mxu0 0.0
    %635 = vmatprep.mubr.f32.mxu0 0.0
    %636 = vmatmul.mubr.f32.gmra.mrb[0].mxu0 %v569
    %v637 = vpop.f32.mrb[0].mxu0
    %v638 = vadd.f32 0.0, %v637
    %v639 = vpop.f32.mrb[0].mxu0
    %640 = vdwg.mxu0
    %v642 = vsel %vm70, %v310, 0
    %644 = vmatprep.subr.mxu0 0.0
    %645 = vmatpush1.msra.mxu0 %v560
    %646 = vmatprep.subr.mxu0 0.0
    %647 = vmatpush1.msra.mxu0 %v561
    %648 = vmatprep.subr.mxu0 0.0
    %649 = vmatpush1.msra.mxu0 %v562
    %650 = vmatprep.subr.mxu0 0.0
    %651 = vmatpush1.msra.mxu0 %v563
    %652 = vmatprep.subr.mxu0 0.0
    %653 = vmatpush1.msra.mxu0 0.0
    %654 = vmatprep.subr.mxu0 0.0
    %655 = vmatpush1.msra.mxu0 0.0
    %656 = vmatprep.subr.mxu0 0.0
    %657 = vmatpush1.msra.mxu0 0.0
    %658 = vmatprep.subr.mxu0 0.0
    %659 = vmatpush1.msra.mxu0 0.0
    %660 = vmatprep.subr.mxu0 0.0
    %661 = vmatpush1.msra.mxu0 0.0
    %662 = vmatprep.subr.mxu0 0.0
    %663 = vmatpush1.msra.mxu0 0.0
    %664 = vmatprep.subr.mxu0 0.0
    %665 = vmatpush1.msra.mxu0 0.0
    %666 = vmatprep.subr.mxu0 0.0
    %667 = vmatpush1.msra.mxu0 0.0
    %668 = vmatprep.subr.mxu0 0.0
    %669 = vmatpush1.msra.mxu0 0.0
    %670 = vmatprep.subr.mxu0 0.0
    %671 = vmatpush1.msra.mxu0 0.0
    %672 = vmatprep.subr.mxu0 0.0
    %673 = vmatpush1.msra.mxu0 0.0
    %674 = vmatprep.subr.mxu0 0.0
    %675 = vmatpush1.msra.mxu0 0.0
    %676 = vmatprep.subr.mxu0 0.0
    %677 = vmatpush1.msra.mxu0 0.0
    %678 = vmatprep.subr.mxu0 0.0
    %679 = vmatpush1.msra.mxu0 0.0
    %680 = vmatprep.subr.mxu0 0.0
    %681 = vmatpush1.msra.mxu0 0.0
    %682 = vmatprep.subr.mxu0 0.0
    %683 = vmatpush1.msra.mxu0 0.0
    %684 = vmatprep.subr.mxu0 0.0
    %685 = vmatpush1.msra.mxu0 0.0
    %686 = vmatprep.subr.mxu0 0.0
    %687 = vmatpush1.msra.mxu0 0.0
    %688 = vmatprep.subr.mxu0 0.0
    %689 = vmatpush1.msra.mxu0 0.0
    %690 = vmatprep.subr.mxu0 0.0
    %691 = vmatpush1.msra.mxu0 0.0
    %692 = vmatprep.subr.mxu0 0.0
    %693 = vmatpush1.msra.mxu0 0.0
    %694 = vmatprep.subr.mxu0 0.0
    %695 = vmatpush1.msra.mxu0 0.0
    %696 = vmatprep.subr.mxu0 0.0
    %697 = vmatpush1.msra.mxu0 0.0
    %698 = vmatprep.subr.mxu0 0.0
    %699 = vmatpush1.msra.mxu0 0.0
    %700 = vmatprep.subr.mxu0 0.0
    %701 = vmatpush1.msra.mxu0 0.0
    %702 = vmatprep.subr.mxu0 0.0
    %703 = vmatpush1.msra.mxu0 0.0
    %704 = vmatprep.subr.mxu0 0.0
    %705 = vmatpush1.msra.mxu0 0.0
    %706 = vmatprep.subr.mxu0 0.0
    %707 = vmatpush1.msra.mxu0 0.0
    %708 = vmatprep.mubr.f32.mxu0 0.0
    %709 = vmatmul.mubr.f32.gmra.mrb[0].mxu0 %v642
    %v710 = vpop.f32.mrb[0].mxu0
    %v711 = vadd.f32 %v638, %v710
    %v712 = vpop.f32.mrb[0].mxu0
    %713 = vdwg.mxu0
    %v714 = vld [vmem:[%s5 + $0x5] sm:$0x1]
    %v715 = vlaneseq
    %v716 = vshrl.u32 %v715, 7
    %v717 = vsub.s32 0, %v716
    %v718 = vrot.slane %v714, %v717
    %v719 = vadd.f32 %v711, %v718
    %v720 = vmax.f32 %v719, 0.0
    %v721 = vld [vmem:[#allocation5 + $0x100] sm:$0xff]
    %v722 = vld [vmem:[#allocation5 + $0x108] sm:$0xff]
    %v723 = vld [vmem:[#allocation5 + $0x110] sm:$0xff]
    %v724 = vld [vmem:[#allocation5 + $0x118] sm:$0xff]
    %v725 = vld [vmem:[#allocation5 + $0x120] sm:$0xff]
    %v726 = vld [vmem:[#allocation5 + $0x128] sm:$0xff]
    %v727 = vld [vmem:[#allocation5 + $0x130] sm:$0xff]
    %v728 = vld [vmem:[#allocation5 + $0x138] sm:$0xff]
    %v730 = vsel %vm70, %v720, 0
    %732 = vmatprep.subr.mxu0 0.0
    %733 = vmatpush1.msra.mxu0 %v725
    %734 = vmatprep.subr.mxu0 0.0
    %735 = vmatpush1.msra.mxu0 %v726
    %736 = vmatprep.subr.mxu0 0.0
    %737 = vmatpush1.msra.mxu0 %v727
    %738 = vmatprep.subr.mxu0 0.0
    %739 = vmatpush1.msra.mxu0 %v728
    %740 = vmatprep.subr.mxu0 0.0
    %741 = vmatpush1.msra.mxu0 0.0
    %742 = vmatprep.subr.mxu0 0.0
    %743 = vmatpush1.msra.mxu0 0.0
    %744 = vmatprep.subr.mxu0 0.0
    %745 = vmatpush1.msra.mxu0 0.0
    %746 = vmatprep.subr.mxu0 0.0
    %747 = vmatpush1.msra.mxu0 0.0
    %748 = vmatprep.subr.mxu0 0.0
    %749 = vmatpush1.msra.mxu0 0.0
    %750 = vmatprep.subr.mxu0 0.0
    %751 = vmatpush1.msra.mxu0 0.0
    %752 = vmatprep.subr.mxu0 0.0
    %753 = vmatpush1.msra.mxu0 0.0
    %754 = vmatprep.subr.mxu0 0.0
    %755 = vmatpush1.msra.mxu0 0.0
    %756 = vmatprep.subr.mxu0 0.0
    %757 = vmatpush1.msra.mxu0 0.0
    %758 = vmatprep.subr.mxu0 0.0
    %759 = vmatpush1.msra.mxu0 0.0
    %760 = vmatprep.subr.mxu0 0.0
    %761 = vmatpush1.msra.mxu0 0.0
    %762 = vmatprep.subr.mxu0 0.0
    %763 = vmatpush1.msra.mxu0 0.0
    %764 = vmatprep.subr.mxu0 0.0
    %765 = vmatpush1.msra.mxu0 0.0
    %766 = vmatprep.subr.mxu0 0.0
    %767 = vmatpush1.msra.mxu0 0.0
    %768 = vmatprep.subr.mxu0 0.0
    %769 = vmatpush1.msra.mxu0 0.0
    %770 = vmatprep.subr.mxu0 0.0
    %771 = vmatpush1.msra.mxu0 0.0
    %772 = vmatprep.subr.mxu0 0.0
    %773 = vmatpush1.msra.mxu0 0.0
    %774 = vmatprep.subr.mxu0 0.0
    %775 = vmatpush1.msra.mxu0 0.0
    %776 = vmatprep.subr.mxu0 0.0
    %777 = vmatpush1.msra.mxu0 0.0
    %778 = vmatprep.subr.mxu0 0.0
    %779 = vmatpush1.msra.mxu0 0.0
    %780 = vmatprep.subr.mxu0 0.0
    %781 = vmatpush1.msra.mxu0 0.0
    %782 = vmatprep.subr.mxu0 0.0
    %783 = vmatpush1.msra.mxu0 0.0
    %784 = vmatprep.subr.mxu0 0.0
    %785 = vmatpush1.msra.mxu0 0.0
    %786 = vmatprep.subr.mxu0 0.0
    %787 = vmatpush1.msra.mxu0 0.0
    %788 = vmatprep.subr.mxu0 0.0
    %789 = vmatpush1.msra.mxu0 0.0
    %790 = vmatprep.subr.mxu0 0.0
    %791 = vmatpush1.msra.mxu0 0.0
    %792 = vmatprep.subr.mxu0 0.0
    %793 = vmatpush1.msra.mxu0 0.0
    %794 = vmatprep.subr.mxu0 0.0
    %795 = vmatpush1.msra.mxu0 0.0
    %796 = vmatprep.mubr.f32.mxu0 0.0
    %797 = vmatmul.mubr.f32.gmra.mrb[0].mxu0 %v730
    %v798 = vpop.f32.mrb[0].mxu0
    %v799 = vadd.f32 0.0, %v798
    %v800 = vpop.f32.mrb[0].mxu0
    %801 = vdwg.mxu0
    %v803 = vsel %vm70, %v559, 0
    %805 = vmatprep.subr.mxu0 0.0
    %806 = vmatpush1.msra.mxu0 %v721
    %807 = vmatprep.subr.mxu0 0.0
    %808 = vmatpush1.msra.mxu0 %v722
    %809 = vmatprep.subr.mxu0 0.0
    %810 = vmatpush1.msra.mxu0 %v723
    %811 = vmatprep.subr.mxu0 0.0
    %812 = vmatpush1.msra.mxu0 %v724
    %813 = vmatprep.subr.mxu0 0.0
    %814 = vmatpush1.msra.mxu0 0.0
    %815 = vmatprep.subr.mxu0 0.0
    %816 = vmatpush1.msra.mxu0 0.0
    %817 = vmatprep.subr.mxu0 0.0
    %818 = vmatpush1.msra.mxu0 0.0
    %819 = vmatprep.subr.mxu0 0.0
    %820 = vmatpush1.msra.mxu0 0.0
    %821 = vmatprep.subr.mxu0 0.0
    %822 = vmatpush1.msra.mxu0 0.0
    %823 = vmatprep.subr.mxu0 0.0
    %824 = vmatpush1.msra.mxu0 0.0
    %825 = vmatprep.subr.mxu0 0.0
    %826 = vmatpush1.msra.mxu0 0.0
    %827 = vmatprep.subr.mxu0 0.0
    %828 = vmatpush1.msra.mxu0 0.0
    %829 = vmatprep.subr.mxu0 0.0
    %830 = vmatpush1.msra.mxu0 0.0
    %831 = vmatprep.subr.mxu0 0.0
    %832 = vmatpush1.msra.mxu0 0.0
    %833 = vmatprep.subr.mxu0 0.0
    %834 = vmatpush1.msra.mxu0 0.0
    %835 = vmatprep.subr.mxu0 0.0
    %836 = vmatpush1.msra.mxu0 0.0
    %837 = vmatprep.subr.mxu0 0.0
    %838 = vmatpush1.msra.mxu0 0.0
    %839 = vmatprep.subr.mxu0 0.0
    %840 = vmatpush1.msra.mxu0 0.0
    %841 = vmatprep.subr.mxu0 0.0
    %842 = vmatpush1.msra.mxu0 0.0
    %843 = vmatprep.subr.mxu0 0.0
    %844 = vmatpush1.msra.mxu0 0.0
    %845 = vmatprep.subr.mxu0 0.0
    %846 = vmatpush1.msra.mxu0 0.0
    %847 = vmatprep.subr.mxu0 0.0
    %848 = vmatpush1.msra.mxu0 0.0
    %849 = vmatprep.subr.mxu0 0.0
    %850 = vmatpush1.msra.mxu0 0.0
    %851 = vmatprep.subr.mxu0 0.0
    %852 = vmatpush1.msra.mxu0 0.0
    %853 = vmatprep.subr.mxu0 0.0
    %854 = vmatpush1.msra.mxu0 0.0
    %855 = vmatprep.subr.mxu0 0.0
    %856 = vmatpush1.msra.mxu0 0.0
    %857 = vmatprep.subr.mxu0 0.0
    %858 = vmatpush1.msra.mxu0 0.0
    %859 = vmatprep.subr.mxu0 0.0
    %860 = vmatpush1.msra.mxu0 0.0
    %861 = vmatprep.subr.mxu0 0.0
    %862 = vmatpush1.msra.mxu0 0.0
    %863 = vmatprep.subr.mxu0 0.0
    %864 = vmatpush1.msra.mxu0 0.0
    %865 = vmatprep.subr.mxu0 0.0
    %866 = vmatpush1.msra.mxu0 0.0
    %867 = vmatprep.subr.mxu0 0.0
    %868 = vmatpush1.msra.mxu0 0.0
    %869 = vmatprep.mubr.f32.mxu0 0.0
    %870 = vmatmul.mubr.f32.gmra.mrb[0].mxu0 %v803
    %v871 = vpop.f32.mrb[0].mxu0
    %v872 = vadd.f32 %v799, %v871
    %v873 = vpop.f32.mrb[0].mxu0
    %874 = vdwg.mxu0
    %v875 = vld [vmem:[%s5 + $0x6] sm:$0x1]
    %v876 = vlaneseq
    %v877 = vshrl.u32 %v876, 7
    %v878 = vsub.s32 0, %v877
    %v879 = vrot.slane %v875, %v878
    %v880 = vadd.f32 %v872, %v879
    %v881 = vmax.f32 %v880, 0.0
    %v882 = vld [vmem:[#allocation5 + $0x140] sm:$0x1]
    %v883 = vlaneseq
    %v884 = vshrl.u32 %v883, 7
    %v885 = vsub.s32 0, %v884
    %v886 = vrot.slane %v882, %v885
    %v887 = vmul.f32 %v881, %v886
    %v888 = vsel %vm394, %v887, 0.0
    %889 = vadd.xlane.f32.xlu0 %v888
    %v890 = vpop.xlane.xlu0 %889
    %v891 = vld [vmem:[%s5 + $0x7] sm:$0x1]
    %v892 = vlaneseq
    %v893 = vshrl.u32 %v892, 7
    %v894 = vsub.s32 0, %v893
    %v895 = vrot.slane %v891, %v894
    %v896 = vadd.f32 %v890, %v895
    %v897 = vsub.f32 0.0, %v896
    %v898 = vmul.f32 %v897, 1.442695
    %v899 = vpow.pop %v898
    %v900 = vadd.f32 %v899, 1.0
    %v901 = vrcp.pop %v900
    %v902 = vmul.f32 1.0, %v901
    %vm903 = vcmask 1024
    %904 = vst.msk [vmem:[%s6] sm:$0x3] %vm903, %v902
    // Predicated region
    $region34: #{tpu_custom_call.1} parent=1 // pred_check
      _
    $region35: #{tpu_custom_call.1} parent=1 // pred_check_branch
      %906 = sbr.rel (0) target = $region37
    $region36: #{tpu_custom_call.1} parent=1 // pred_region
      _
    $region37: #{tpu_custom_call.1} parent=1 // pred_fallthru
      _
    // Predicated region
    $region38: #{tpu_custom_call.1} parent=1 // pred_check
      _
    $region39: #{tpu_custom_call.1} parent=1 // pred_check_branch
      %908 = sbr.rel (0) target = $region41
    $region40: #{tpu_custom_call.1} parent=1 // pred_region
      %s910 = ssub.s32 32, 32
      %911 = vsyncadd [#allocation4], %s910
      %s913 = sshll.u32 [#allocation7], 4
      %s914 = int_to_ptr.vmem [resolvable:$true] %s913
      %916 = dma.vmem_to_hbm [thread:$0]  %s914, 32, %s7, [#allocation4]
    $region41: #{tpu_custom_call.1} parent=1 // pred_fallthru
      _
    // Predicated region
    $region42: #{tpu_custom_call.1} parent=1 // pred_check
      _
    $region43: #{tpu_custom_call.1} parent=1 // pred_check_branch
      %918 = sbr.rel (0) target = $region45
    $region44: #{tpu_custom_call.1} parent=1 // pred_region
      %s920 = ssub.s32 32, 32
      %921 = vsyncadd [#allocation9], %s920
      %s923 = sshll.u32 [#allocation8], 4
      %s924 = int_to_ptr.vmem [resolvable:$true] %s923
      %926 = dma.vmem_to_hbm [thread:$0]  %s924, 32, %s8, [#allocation9]
    $region45: #{tpu_custom_call.1} parent=1 // pred_fallthru
      _
    // Predicated region
    $region46: #{tpu_custom_call.1} parent=1 // pred_check
      _
    $region47: #{tpu_custom_call.1} parent=1 // pred_check_branch
      %928 = sbr.rel (0) target = $region49
    $region48: #{tpu_custom_call.1} parent=1 // pred_region
      %s930 = ssub.s32 32, 32
      %931 = vsyncadd [#allocation9], %s930
      %s933 = sshll.u32 [#allocation10], 4
      %s934 = int_to_ptr.vmem [resolvable:$true] %s933
      %936 = dma.vmem_to_hbm [thread:$0]  %s934, 32, %s9, [#allocation9]
    $region49: #{tpu_custom_call.1} parent=1 // pred_fallthru
      _
    // Predicated region
    $region50: #{tpu_custom_call.1} parent=1 // pred_check
      _
    $region51: #{tpu_custom_call.1} parent=1 // pred_check_branch
      %938 = sbr.rel (0) target = $region53
    $region52: #{tpu_custom_call.1} parent=1 // pred_region
      %s940 = ssub.s32 32, 32
      %941 = vsyncadd [#allocation12], %s940
      %s943 = sshll.u32 [#allocation11], 4
      %s944 = int_to_ptr.vmem [resolvable:$true] %s943
      %946 = dma.vmem_to_hbm [thread:$0]  %s944, 32, %s10, [#allocation12]
    $region53: #{tpu_custom_call.1} parent=1 // pred_fallthru
      _
    // Predicated region
    $region54: #{tpu_custom_call.1} parent=1 // pred_check
      _
    $region55: #{tpu_custom_call.1} parent=1 // pred_check_branch
      %948 = sbr.rel (0) target = $region57
    $region56: #{tpu_custom_call.1} parent=1 // pred_region
      _
    $region57: #{tpu_custom_call.1} parent=1 // pred_fallthru
      _
    // Predicated region
    $region58: #{tpu_custom_call.1} parent=1 // pred_check
      _
    $region59: #{tpu_custom_call.1} parent=1 // pred_check_branch
      %950 = sbr.rel (0) target = $region61
    $region60: #{tpu_custom_call.1} parent=1 // pred_region
      %951 = dma.done [#allocation4], 32
    $region61: #{tpu_custom_call.1} parent=1 // pred_fallthru
      _
    // Predicated region
    $region62: #{tpu_custom_call.1} parent=1 // pred_check
      _
    $region63: #{tpu_custom_call.1} parent=1 // pred_check_branch
      %953 = sbr.rel (0) target = $region65
    $region64: #{tpu_custom_call.1} parent=1 // pred_region
      %954 = dma.done [#allocation9], 32
    $region65: #{tpu_custom_call.1} parent=1 // pred_fallthru
      _
    // Predicated region
    $region66: #{tpu_custom_call.1} parent=1 // pred_check
      _
    $region67: #{tpu_custom_call.1} parent=1 // pred_check_branch
      %956 = sbr.rel (0) target = $region69
    $region68: #{tpu_custom_call.1} parent=1 // pred_region
      %957 = dma.done [#allocation9], 32
    $region69: #{tpu_custom_call.1} parent=1 // pred_fallthru
      _
    // Predicated region
    $region70: #{tpu_custom_call.1} parent=1 // pred_check
      _
    $region71: #{tpu_custom_call.1} parent=1 // pred_check_branch
      %959 = sbr.rel (0) target = $region73
    $region72: #{tpu_custom_call.1} parent=1 // pred_region
      %960 = dma.done [#allocation12], 32
    $region73: #{tpu_custom_call.1} parent=1 // pred_fallthru
      _
    %961 = vsyncpa [#allocation3], 1
    %962 = vsyncpa [#allocation6], 1
    %963 = vsyncpa [#allocation4], 1
    %964 = vsyncpa [#allocation9], 1
    %965 = vsyncpa [#allocation12], 1

</llo_original>
